<compile_context>
chip_gen: v7x
topology: tpu7x:2x2x1
jax: 0.10.0
libtpu: 0.0.40
codegen_flags: <defaults>
</compile_context>

<pallas_src>
import numpy as np
import jax
import jax.numpy as jnp
from jax.experimental import pallas as pl
from jax.experimental.pallas import tpu as pltpu


# ----------------------------------------------------------------------------- kernel
def add_bias_kernel(x_ref, b_ref, o_ref):
    # Pure VPU elementwise add; bias row (1, tile_l) sublane-broadcasts over the tile.
    o_ref[...] = x_ref[...] + b_ref[...]


# ----------------------------------------------------------------------------- tiling
def _vmem_capacity_bytes():
    try:
        return int(pltpu.get_tpu_info().vmem_capacity_bytes)
    except Exception:
        return 64 << 20  # conservative fallback (safe on every generation)


def _sublane_multiple(dtype):
    # 8 for f32, 16 for bf16, 32 for int8/fp8 (packed sublane count).
    return max(8, 32 // max(1, jnp.dtype(dtype).itemsize))


def _round_up(v, m):
    return -(-v // m) * m


def _pick_tiles(n_rows, n_lanes, dtype):
    """Pick (tile_r, tile_l, vmem_limit) for a (n_rows, n_lanes) streaming add.

    tile sized so each x/out buffer is ~4 MiB, 4 live buffers (double-buffered
    in + out) fit in a generation-aware VMEM budget, and the parallel row axis
    keeps >=2 steps when possible (v7x megacore)."""
    itemsize = jnp.dtype(dtype).itemsize
    subl = _sublane_multiple(dtype)
    budget = min(_vmem_capacity_bytes() // 2, 64 << 20)  # 64 MiB v5e/v6e, 32 MiB v7x
    target_tile_bytes = 4 << 20                          # ~4 MiB per x/out buffer

    # Lane-axis fallback tiling for very wide rows (keeps double buffering in budget).
    tile_l = n_lanes
    if n_lanes % 128 == 0 and subl * n_lanes * itemsize * 4 > budget:
        max_l = max(128, (budget // (4 * subl * itemsize) // 128) * 128)
        tile_l = min(n_lanes, max_l)

    bytes_per_row = tile_l * itemsize
    rows_target = max(subl, target_tile_bytes // bytes_per_row)
    rows_budget = max(subl, budget // (4 * bytes_per_row))
    tile_r = min(n_rows, rows_target, rows_budget)

    # v7x has 2 TensorCores: keep >=2 steps on the parallel row axis when rows allow.
    if tile_r >= n_rows and tile_l == n_lanes:
        half = _round_up(-(-n_rows // 2), subl)
        if half < n_rows:
            tile_r = half

    if tile_r < n_rows:
        tile_r = max(subl, (tile_r // subl) * subl)   # sublane-packed multiple
    tile_r = min(tile_r, n_rows)                      # full dim is always legal
    return tile_r, tile_l, budget


# ----------------------------------------------------------------------------- pallas call
def _add_bias_2d(x2d, b_row):
    R, L = x2d.shape
    itemsize = jnp.dtype(x2d.dtype).itemsize
    tile_r, tile_l, vmem_limit = _pick_tiles(R, L, x2d.dtype)
    grid = (pl.cdiv(R, tile_r), pl.cdiv(L, tile_l))

    cost = pl.CostEstimate(
        flops=R * L,
        transcendentals=0,
        bytes_accessed=2 * R * L * itemsize + L * itemsize,
    )

    return pl.pallas_call(
        add_bias_kernel,
        out_shape=jax.ShapeDtypeStruct((R, L), x2d.dtype),
        grid_spec=pl.GridSpec(
            grid=grid,
            in_specs=[
                pl.BlockSpec((tile_r, tile_l), lambda i, j: (i, j)),
                pl.BlockSpec((1, tile_l), lambda i, j: (0, j)),   # bias resident across rows
            ],
            out_specs=pl.BlockSpec((tile_r, tile_l), lambda i, j: (i, j)),
        ),
        compiler_params=pltpu.CompilerParams(
            dimension_semantics=("parallel", "arbitrary"),
            vmem_limit_bytes=int(vmem_limit),
        ),
        cost_estimate=cost,
    )(x2d, b_row)


def _lane_pack_factor(n_rows, row_elems):
    """Fold k batch rows into the lane axis so stores get closer to 128 lanes."""
    k = 1
    while k * row_elems < 128 and n_rows % (2 * k) == 0:
        k *= 2
    return k


# ----------------------------------------------------------------------------- forward
_SMALL_INPUT_BYTES = 1 << 20   # below this, a fused XLA add beats pallas launch overhead


def add_bias_forward(x, bias_param, *, force_pallas=False):
    """AddBias.forward.  bias_param has torch layout (C, 1) (bias.unsqueeze(1))."""
    C = bias_param.shape[0]
    b_vec = bias_param.reshape(C).astype(x.dtype)
    itemsize = jnp.dtype(x.dtype).itemsize

    if x.ndim == 2:
        B, Cx = x.shape
        assert Cx == C, "channel mismatch"
        if not force_pallas and x.size * itemsize < _SMALL_INPUT_BYTES:
            return x + b_vec.reshape(1, C)                      # tiny: fused XLA add

        total = B * C
        if total % 128 == 0 and 128 % C == 0:
            # Fully lane-dense flat view: every output row is >=128 unmasked lanes.
            W = 128
            while W < 1024 and total % (2 * W) == 0:
                W *= 2
            xp = x.reshape(total // W, W)
            bp = jnp.tile(b_vec, (W // C,)).reshape(1, W)
            return _add_bias_2d(xp, bp).reshape(B, C)

        # Fallback: fold k batch rows into the lane axis to widen stores.
        k = _lane_pack_factor(B, C)
        if k > 1:
            xp = x.reshape(B // k, k * C)
            bp = jnp.tile(b_vec, (k,)).reshape(1, k * C)
            return _add_bias_2d(xp, bp).reshape(B, C)
        return _add_bias_2d(x, b_vec.reshape(1, C))

    elif x.ndim == 4:
        B, Cx, H, W = x.shape
        assert Cx == C, "channel mismatch"
        if not force_pallas and x.size * itemsize < _SMALL_INPUT_BYTES:
            return x + b_vec.reshape(1, C, 1, 1)                # tiny: fused XLA add
        L = C * H * W
        xp = x.reshape(B, L)                                    # free row-major reshape
        bp = jnp.repeat(b_vec, H * W).reshape(1, L)             # per-channel bias row
        return _add_bias_2d(xp, bp).reshape(B, C, H, W)

    else:
        raise ValueError(f"AddBias expects 2-D or 4-D input, got ndim={x.ndim}")


# ----------------------------------------------------------------------------- demo / check
if __name__ == "__main__":
    key = jax.random.PRNGKey(0)
    kb, k2, k4, k4b, k2b = jax.random.split(key, 5)

    C = 4
    # torch stores the parameter as bias.unsqueeze(1) -> shape (C, 1)
    bias_param = jax.random.normal(kb, (C, 1), jnp.float32)

    # 4-D case (conv activations): [batch=2, channels=4, 16, 16]  -- force the Pallas path
    x4 = jax.random.normal(k4, (2, C, 16, 16), jnp.float32)
    out4 = add_bias_forward(x4, bias_param, force_pallas=True)
    out4_auto = add_bias_forward(x4, bias_param)                 # small-input fast path

    # 2-D case (fc activations): [batch=8, channels=4]  -- force the Pallas path
    x2 = jax.random.normal(k2, (8, C), jnp.float32)
    out2 = add_bias_forward(x2, bias_param, force_pallas=True)
    out2_auto = add_bias_forward(x2, bias_param)                 # small-input fast path

    # Larger cases that exercise the tiled Pallas path with a real (>1 step) grid.
    x4b = jax.random.normal(k4b, (512, C, 16, 16), jnp.float32)  # 2 MiB, lane width 1024
    out4b = add_bias_forward(x4b, bias_param)
    x2b = jax.random.normal(k2b, (1024, C), jnp.float32)         # lane-dense flat view
    out2b = add_bias_forward(x2b, bias_param, force_pallas=True)

    jax.block_until_ready((out4, out2, out4_auto, out2_auto, out4b, out2b))

    # Reference (plain JAX, mirrors the torch forward exactly)
    ref4 = x4 + bias_param.reshape(1, C, 1, 1)
    ref2 = x2 + bias_param.reshape(1, C)
    ref4b = x4b + bias_param.reshape(1, C, 1, 1)
    ref2b = x2b + bias_param.reshape(1, C)
    np.testing.assert_allclose(np.asarray(out4), np.asarray(ref4), rtol=1e-6, atol=1e-6)
    np.testing.assert_allclose(np.asarray(out4_auto), np.asarray(ref4), rtol=1e-6, atol=1e-6)
    np.testing.assert_allclose(np.asarray(out2), np.asarray(ref2), rtol=1e-6, atol=1e-6)
    np.testing.assert_allclose(np.asarray(out2_auto), np.asarray(ref2), rtol=1e-6, atol=1e-6)
    np.testing.assert_allclose(np.asarray(out4b), np.asarray(ref4b), rtol=1e-6, atol=1e-6)
    np.testing.assert_allclose(np.asarray(out2b), np.asarray(ref2b), rtol=1e-6, atol=1e-6)

    print("KERNEL_OK")
</pallas_src>

<mosaic_0001>
module attributes {stable_mosaic.version = 11 : i64} {
  func.func @add_bias_kernel(%arg0: i32, %arg1: i32, %arg2: memref<2x1024xf32, #tpu.memory_space<vmem>>, %arg3: memref<1x1024xf32, #tpu.memory_space<vmem>>, %arg4: memref<2x1024xf32, #tpu.memory_space<vmem>>) attributes {dimension_semantics = [#tpu.dimension_semantics<parallel>, #tpu.dimension_semantics<arbitrary>], iteration_bounds = array<i64: 1, 1>, scalar_prefetch = 0 : i64, scratch_operands = 0 : i64, tpu.core_type = #tpu.core_type<tc>, window_params = [{transform_indices = @transform_0, window_bounds = array<i64: 2, 1024>}, {transform_indices = @transform_1, window_bounds = array<i64: 1, 1024>}, {transform_indices = @transform_2, window_bounds = array<i64: 2, 1024>}]} {
    %c0 = arith.constant 0 : index
    %c0_0 = arith.constant 0 : index
    %0 = vector.load %arg2[%c0, %c0_0] : memref<2x1024xf32, #tpu.memory_space<vmem>>, vector<2x1024xf32>
    %c0_1 = arith.constant 0 : index
    %c0_2 = arith.constant 0 : index
    %1 = vector.load %arg3[%c0_1, %c0_2] : memref<1x1024xf32, #tpu.memory_space<vmem>>, vector<1x1024xf32>
    %2 = vector.broadcast %1 : vector<1x1024xf32> to vector<2x1024xf32>
    %3 = arith.addf %0, %2 : vector<2x1024xf32>
    %c0_3 = arith.constant 0 : index
    %c0_4 = arith.constant 0 : index
    %4 = vector.load %arg4[%c0_3, %c0_4] : memref<2x1024xf32, #tpu.memory_space<vmem>>, vector<2x1024xf32>
    tpu.vector_store %arg4[%c0_3, %c0_4], %3 {strides = array<i32>} : memref<2x1024xf32, #tpu.memory_space<vmem>>, vector<2x1024xf32>,
    return
  }
  func.func @transform_0(%arg0: i32, %arg1: i32) -> (i32, i32) {
    %c0_i32 = arith.constant 0 : i32
    return %arg0, %arg1 : i32, i32
  }
  func.func @transform_1(%arg0: i32, %arg1: i32) -> (i32, i32) {
    %c0_i32 = arith.constant 0 : i32
    %c0_i32_0 = arith.constant 0 : i32
    return %c0_i32, %arg1 : i32, i32
  }
  func.func @transform_2(%arg0: i32, %arg1: i32) -> (i32, i32) {
    %c0_i32 = arith.constant 0 : i32
    return %arg0, %arg1 : i32, i32
  }
}

</mosaic_0001>

<llo_original>
// kernel: tpu_custom_call.1
$region0: #{tpu_custom_call.1}
  #allocation0 [shape = 'u32[]', space=smem, size = 0x4, offset = 0x4, fixed_abs, tag = 'smem constant byte address 0x4 - core index']
  #allocation1 [shape = 'u32[144,128]{1,0:T(1,128)}', space=vmem, size = 0x12000, scoped, tag = 'internal scratch']
  %s0 = inlined_call_operand.hbm [shape: f32[2,1024], index: 0, kind: input, shape index: {}]
  %s1 = inlined_call_operand.hbm [shape: f32[1,1024], index: 1, kind: input, shape index: {}]
  %s2 = inlined_call_operand.hbm [shape: f32[2,1024], index: 2, kind: output, shape index: {}]
  %s3 = sld [smem:[#allocation0]]
  $region26: #{tpu_custom_call.1} parent=0
    _
  %s5 = ssub.s32 1, %s3
  %s6 = scalar_select 0, %s5, %s3
  $region1: #{tpu_custom_call.1} parent=0
    #allocation2 [shape = 'u8[8192]{0}', space=vmem, size = 0x2000, scoped, tag = 'input window, operand 0, single buffered']
    #allocation3 [shape = 's32[1]{0}', space=sflag, size = 0x4, scoped, tag = 'scoped memory for tpu_custom_call.1']
    #allocation4 [shape = 's32[1]{0}', space=sflag, size = 0x4, scoped, tag = 'scoped memory for tpu_custom_call.1']
    #allocation5 [shape = 'u8[4096]{0}', space=vmem, size = 0x1000, scoped, tag = 'input window, operand 1, single buffered']
    #allocation6 [shape = 's32[1]{0}', space=sflag, size = 0x4, scoped, tag = 'scoped memory for tpu_custom_call.1']
    #allocation7 [shape = 'u8[8192]{0}', space=vmem, size = 0x2000, scoped, tag = 'output window, operand 0, single buffered']
    %7 = vsyncpa [#allocation3], 0
    %8 = vsyncpa [#allocation6], 0
    %9 = vsyncpa [#allocation4], 0
    // Predicated region
    $region2: #{tpu_custom_call.1} parent=1 // pred_check
      _
    $region3: #{tpu_custom_call.1} parent=1 // pred_check_branch
      %11 = sbr.rel (0) target = $region5
    $region4: #{tpu_custom_call.1} parent=1 // pred_region
      %s13 = ssub.s32 256, 256
      %14 = vsyncadd [#allocation3], %s13
      %s16 = sshll.u32 [#allocation2], 4
      %s17 = int_to_ptr.vmem [resolvable:$true] %s16
      %19 = dma.hbm_to_vmem [thread:$0]  %s0, 256, %s17, [#allocation3]
    $region5: #{tpu_custom_call.1} parent=1 // pred_fallthru
      _
    // Predicated region
    $region6: #{tpu_custom_call.1} parent=1 // pred_check
      _
    $region7: #{tpu_custom_call.1} parent=1 // pred_check_branch
      %21 = sbr.rel (0) target = $region9
    $region8: #{tpu_custom_call.1} parent=1 // pred_region
      %s23 = ssub.s32 128, 128
      %24 = vsyncadd [#allocation6], %s23
      %s26 = sshll.u32 [#allocation5], 4
      %s27 = int_to_ptr.vmem [resolvable:$true] %s26
      %29 = dma.hbm_to_vmem [thread:$0]  %s1, 128, %s27, [#allocation6]
    $region9: #{tpu_custom_call.1} parent=1 // pred_fallthru
      _
    // Predicated region
    $region10: #{tpu_custom_call.1} parent=1 // pred_check
      _
    $region11: #{tpu_custom_call.1} parent=1 // pred_check_branch
      %31 = sbr.rel (0) target = $region13
    $region12: #{tpu_custom_call.1} parent=1 // pred_region
      %32 = dma.done [#allocation3], 256
    $region13: #{tpu_custom_call.1} parent=1 // pred_fallthru
      _
    // Predicated region
    $region14: #{tpu_custom_call.1} parent=1 // pred_check
      _
    $region15: #{tpu_custom_call.1} parent=1 // pred_check_branch
      %34 = sbr.rel (0) target = $region17
    $region16: #{tpu_custom_call.1} parent=1 // pred_region
      %35 = dma.done [#allocation6], 128
    $region17: #{tpu_custom_call.1} parent=1 // pred_fallthru
      _
    %v36 = vld [vmem:[#allocation2] sm:$0xff]
    %v37 = vld [vmem:[#allocation2 + $0x8] sm:$0xff]
    %v38 = vld [vmem:[#allocation5] sm:$0xff]
    %v40 = vlaneseq
    %v41 = vshrl.u32 %v40, 7
    %v42 = vsub.s32 0, %v41
    %v43 = vrot.slane %v38, %v42
    %v44 = vlaneseq
    %v45 = vshrl.u32 %v44, 7
    %v46 = vsub.s32 1, %v45
    %v47 = vrot.slane %v38, %v46
    %v48 = vlaneseq
    %v49 = vshrl.u32 %v48, 7
    %v50 = vsub.s32 2, %v49
    %v51 = vrot.slane %v38, %v50
    %v52 = vlaneseq
    %v53 = vshrl.u32 %v52, 7
    %v54 = vsub.s32 3, %v53
    %v55 = vrot.slane %v38, %v54
    %v56 = vlaneseq
    %v57 = vshrl.u32 %v56, 7
    %v58 = vsub.s32 4, %v57
    %v59 = vrot.slane %v38, %v58
    %v60 = vlaneseq
    %v61 = vshrl.u32 %v60, 7
    %v62 = vsub.s32 5, %v61
    %v63 = vrot.slane %v38, %v62
    %v64 = vlaneseq
    %v65 = vshrl.u32 %v64, 7
    %v66 = vsub.s32 6, %v65
    %v67 = vrot.slane %v38, %v66
    %v68 = vlaneseq
    %v69 = vshrl.u32 %v68, 7
    %v70 = vsub.s32 7, %v69
    %v71 = vrot.slane %v38, %v70
    %v72 = vcombine.low %v43, %v47
    %v73 = vcombine.low %v51, %v55
    %v75 = vunpack.c.l.s4 1983009808
    %v76 = vunpack.c.0.s8 %v75
    %v77 = vlaneseq
    %v78 = vshrl.u32 %v77, 7
    %v79 = vsub.s32 %v76, %v78
    %v80 = vrot.slane %v72, %v79
    %v82 = vunpack.c.l.s4 1983009808
    %v83 = vunpack.c.0.s8 %v82
    %v84 = vlaneseq
    %v85 = vshrl.u32 %v84, 7
    %v86 = vsub.s32 %v83, %v85
    %v87 = vrot.slane %v73, %v86
    %v88 = vcombine.low %v80, %v87
    %v89 = vcombine.low %v59, %v63
    %v90 = vcombine.low %v67, %v71
    %v92 = vunpack.c.l.s4 1983009808
    %v93 = vunpack.c.0.s8 %v92
    %v94 = vlaneseq
    %v95 = vshrl.u32 %v94, 7
    %v96 = vsub.s32 %v93, %v95
    %v97 = vrot.slane %v89, %v96
    %v99 = vunpack.c.l.s4 1983009808
    %v100 = vunpack.c.0.s8 %v99
    %v101 = vlaneseq
    %v102 = vshrl.u32 %v101, 7
    %v103 = vsub.s32 %v100, %v102
    %v104 = vrot.slane %v90, %v103
    %v105 = vcombine.low %v97, %v104
    %v108 = vadd.f32 %v36, %v88
    %v109 = vadd.f32 %v37, %v105
    %110 = vst [vmem:[#allocation7] sm:$0xff] %v108
    %111 = vst [vmem:[#allocation7 + $0x8] sm:$0xff] %v109
    // Predicated region
    $region18: #{tpu_custom_call.1} parent=1 // pred_check
      _
    $region19: #{tpu_custom_call.1} parent=1 // pred_check_branch
      %113 = sbr.rel (0) target = $region21
    $region20: #{tpu_custom_call.1} parent=1 // pred_region
      %s115 = ssub.s32 256, 256
      %116 = vsyncadd [#allocation4], %s115
      %s118 = sshll.u32 [#allocation7], 4
      %s119 = int_to_ptr.vmem [resolvable:$true] %s118
      %121 = dma.vmem_to_hbm [thread:$0]  %s119, 256, %s2, [#allocation4]
    $region21: #{tpu_custom_call.1} parent=1 // pred_fallthru
      _
    // Predicated region
    $region22: #{tpu_custom_call.1} parent=1 // pred_check
      _
    $region23: #{tpu_custom_call.1} parent=1 // pred_check_branch
      %123 = sbr.rel (0) target = $region25
    $region24: #{tpu_custom_call.1} parent=1 // pred_region
      %124 = dma.done [#allocation4], 256
    $region25: #{tpu_custom_call.1} parent=1 // pred_fallthru
      _
    %125 = vsyncpa [#allocation3], 1
    %126 = vsyncpa [#allocation6], 1
    %127 = vsyncpa [#allocation4], 1

</llo_original>
